<compile_context>
chip_gen: v7x
topology: tpu7x:2x2x1
jax: 0.10.0
libtpu: 0.0.40
codegen_flags: <defaults>
</compile_context>

<pallas_src>
import functools

import jax
import jax.numpy as jnp
from jax.experimental import pallas as pl
from jax.experimental.pallas import tpu as pltpu


def _round_up(v, m):
    return -(-v // m) * m


def _pick_channel_group(C, pad, H2W2):
    """Fold g channels into the lane axis so g*H2*W2 >= 128 (lane-dense output)."""
    if H2W2 >= 128:
        return 1
    for g in range(max(1, 128 // H2W2), 0, -1):
        if C % g == 0 and pad % g == 0:
            return g
    return 1


def _block_bytes(B, Cg, CoutG, lanes_in, lanes_out, itemsize):
    """(8,128)-padded VMEM bytes of one input block and one output block."""
    in_b = _round_up(B * Cg, 8) * lanes_in * itemsize
    out_b = B * _round_up(CoutG, 8) * lanes_out * itemsize
    return in_b, out_b


def _pick_images_per_step(N, Cg, CoutG, lanes_in, lanes_out, itemsize,
                          sel_bytes, budget_bytes=32 << 20):
    """Images per grid step.

    Largest divisor B of N whose double-buffered, (8,128)-padded blocks (plus
    the resident selection matrix) fit the budget, with the block's sublane
    extent a multiple of 8 (or the full array).  Prefer an even grid of >= 2
    steps so v7x's two TensorCores stay balanced.
    """
    def fits(B):
        ib, ob = _block_bytes(B, Cg, CoutG, lanes_in, lanes_out, itemsize)
        return 2 * (ib + ob) + 2 * sel_bytes <= budget_bytes

    def aligned(B):  # sublane rule: multiple of 8 or equal to full array dim
        return (B * Cg) % 8 == 0 or B == N

    divs = [b for b in range(1, N + 1) if N % b == 0]
    cands = [b for b in divs if fits(b) and aligned(b)]
    if not cands:
        cands = [b for b in divs if aligned(b)] or [N]
        return min(cands)
    even = [b for b in cands if (N // b) >= 2 and (N // b) % 2 == 0]
    return max(even) if even else max(cands)


def _selection_matrix(H, W, H2, W2, g, dtype):
    """Block-diagonal 0/1 matrix (g*H*W, g*H2*W2) implementing [:, ::2, ::2]."""
    dst = jnp.arange(g * H2 * W2, dtype=jnp.int32)
    j = dst // (H2 * W2)
    rem = dst % (H2 * W2)
    h2 = rem // W2
    w2 = rem % W2
    src_match = j * (H * W) + (2 * h2) * W + 2 * w2          # (g*H2*W2,)
    src = jnp.arange(g * H * W, dtype=jnp.int32)
    return (src[:, None] == src_match[None, :]).astype(dtype)  # (g*H*W, g*H2*W2)


def _shortcut_kernel(sel_ref, x_ref, o_ref, *, B, Cg, padG, LOUT):
    # sel_ref: (g*H*W, g*H2*W2)   resident 0/1 selection matrix (fetched once)
    # x_ref:   (B*Cg, g*H*W)      B images x (C/g) channel-group rows, lane-dense
    # o_ref:   (B, Cout/g, g*H2*W2)
    sub = jnp.dot(x_ref[...], sel_ref[...],
                  preferred_element_type=jnp.float32)          # (B*Cg, LOUT)
    sub = sub.reshape(B, Cg, LOUT).astype(o_ref.dtype)

    # Channel zero-pad: direct slice stores (no concatenate copy of the tile).
    if padG > 0:
        zpad = jnp.zeros((B, padG, LOUT), o_ref.dtype)
        o_ref[:, pl.ds(0, padG), :] = zpad
        o_ref[:, pl.ds(padG + Cg, padG), :] = zpad
    o_ref[:, pl.ds(padG, Cg), :] = sub


def lambda_layer_shortcut(x, planes):
    """Pallas implementation of the resnet_cifar option-'A' LambdaLayer shortcut (NCHW)."""
    N, C, H, W = x.shape
    pad = planes // 4
    H2, W2 = (H + 1) // 2, (W + 1) // 2          # ::2 semantics
    Cout = C + 2 * pad

    g = _pick_channel_group(C, pad, H2 * W2)
    Cg, CoutG = C // g, Cout // g
    K, LOUT = g * H * W, g * H2 * W2
    itemsize = jnp.dtype(x.dtype).itemsize

    lanes_in = _round_up(K, 128)
    lanes_out = _round_up(LOUT, 128)
    sel_bytes = _round_up(K, 8) * lanes_out * itemsize

    B = _pick_images_per_step(N, Cg, CoutG, lanes_in, lanes_out, itemsize, sel_bytes)
    grid = (N // B,)

    in_blk, out_blk = _block_bytes(B, Cg, CoutG, lanes_in, lanes_out, itemsize)
    vmem_need = 2 * (in_blk + out_blk) + 2 * sel_bytes
    vmem_limit = int(max(vmem_need + (4 << 20), 32 << 20))

    # Free reshapes of the NCHW buffers (no transposes, no data movement).
    x_rows = x.reshape(N * Cg, K)
    sel = _selection_matrix(H, W, H2, W2, g, x.dtype)

    kernel = functools.partial(_shortcut_kernel, B=B, Cg=Cg, padG=pad // g, LOUT=LOUT)

    out = pl.pallas_call(
        kernel,
        out_shape=jax.ShapeDtypeStruct((N, CoutG, LOUT), x.dtype),
        grid_spec=pltpu.PrefetchScalarGridSpec(
            num_scalar_prefetch=0,
            grid=grid,
            in_specs=[
                pl.BlockSpec((K, LOUT), lambda i: (0, 0)),      # resident sel matrix
                pl.BlockSpec((B * Cg, K), lambda i: (i, 0)),    # per-step image block
            ],
            out_specs=pl.BlockSpec((B, CoutG, LOUT), lambda i: (i, 0, 0)),
        ),
        compiler_params=pltpu.CompilerParams(
            dimension_semantics=("parallel",),
            vmem_limit_bytes=vmem_limit,
        ),
    )(sel, x_rows)

    return out.reshape(N, Cout, H2, W2)


if __name__ == "__main__":
    key = jax.random.PRNGKey(0)
    N, C, H, W = 2, 4, 16, 16
    planes = 8   # channel pad = planes // 4 = 2 per side -> Cout = 8
    x = jax.random.normal(key, (N, C, H, W), dtype=jnp.float32)

    out = jax.block_until_ready(lambda_layer_shortcut(x, planes))

    # plain-JAX reference of the wrapped lambda
    p = planes // 4
    ref = jnp.pad(x[:, :, ::2, ::2], ((0, 0), (p, p), (0, 0), (0, 0)))
    assert out.shape == ref.shape, (out.shape, ref.shape)
    assert jnp.allclose(out, ref, atol=1e-5), float(jnp.max(jnp.abs(out - ref)))
    print("KERNEL_OK")
</pallas_src>

<mosaic_0001>
module attributes {stable_mosaic.version = 11 : i64} {
  func.func @_shortcut_kernel(%arg0: i32, %arg1: memref<512x128xf32, #tpu.memory_space<vmem>>, %arg2: memref<4x512xf32, #tpu.memory_space<vmem>>, %arg3: memref<2x4x128xf32, #tpu.memory_space<vmem>>) attributes {dimension_semantics = [#tpu.dimension_semantics<parallel>], iteration_bounds = array<i64: 1>, scalar_prefetch = 0 : i64, scratch_operands = 0 : i64, tpu.core_type = #tpu.core_type<tc>, window_params = [{pipeline_mode = #tpu.pipeline_mode<synchronous>, transform_indices = @transform_0, window_bounds = array<i64: 512, 128>}, {transform_indices = @transform_1, window_bounds = array<i64: 4, 512>}, {transform_indices = @transform_2, window_bounds = array<i64: 2, 4, 128>}]} {
    %c0 = arith.constant 0 : index
    %c0_0 = arith.constant 0 : index
    %0 = vector.load %arg2[%c0, %c0_0] : memref<4x512xf32, #tpu.memory_space<vmem>>, vector<4x512xf32>
    %c0_1 = arith.constant 0 : index
    %c0_2 = arith.constant 0 : index
    %1 = vector.load %arg1[%c0_1, %c0_2] : memref<512x128xf32, #tpu.memory_space<vmem>>, vector<512x128xf32>
    %cst = arith.constant dense<0.000000e+00> : vector<4x128xf32>
    %2 = tpu.matmul %0, %1, %cst {dimension_numbers = #tpu.dot_dimension_numbers<[1], [0], [0], [1], [0, 0, 1, 1], [], []>} : vector<4x512xf32>, vector<512x128xf32>, vector<4x128xf32> -> vector<4x128xf32>
    %3 = vector.shape_cast %2 : vector<4x128xf32> to vector<2x2x128xf32>
    %cst_3 = arith.constant 0.000000e+00 : f32
    %4 = vector.broadcast %cst_3 : f32 to vector<2x1x128xf32>
    %c0_4 = arith.constant 0 : index
    %c0_5 = arith.constant 0 : index
    %c0_6 = arith.constant 0 : index
    %5 = vector.load %arg3[%c0_4, %c0_5, %c0_6] : memref<2x4x128xf32, #tpu.memory_space<vmem>>, vector<2x1x128xf32>
    tpu.vector_store %arg3[%c0_4, %c0_5, %c0_6], %4 {strides = array<i32>} : memref<2x4x128xf32, #tpu.memory_space<vmem>>, vector<2x1x128xf32>,
    %c0_7 = arith.constant 0 : index
    %c3 = arith.constant 3 : index
    %c0_8 = arith.constant 0 : index
    %6 = vector.load %arg3[%c0_7, %c3, %c0_8] : memref<2x4x128xf32, #tpu.memory_space<vmem>>, vector<2x1x128xf32>
    tpu.vector_store %arg3[%c0_7, %c3, %c0_8], %4 {strides = array<i32>} : memref<2x4x128xf32, #tpu.memory_space<vmem>>, vector<2x1x128xf32>,
    %c0_9 = arith.constant 0 : index
    %c1 = arith.constant 1 : index
    %c0_10 = arith.constant 0 : index
    %7 = vector.load %arg3[%c0_9, %c1, %c0_10] : memref<2x4x128xf32, #tpu.memory_space<vmem>>, vector<2x2x128xf32>
    tpu.vector_store %arg3[%c0_9, %c1, %c0_10], %3 {strides = array<i32>} : memref<2x4x128xf32, #tpu.memory_space<vmem>>, vector<2x2x128xf32>,
    return
  }
  func.func @transform_0(%arg0: i32) -> (i32, i32) {
    %c0_i32 = arith.constant 0 : i32
    %c0_i32_0 = arith.constant 0 : i32
    %c0_i32_1 = arith.constant 0 : i32
    return %c0_i32, %c0_i32_0 : i32, i32
  }
  func.func @transform_1(%arg0: i32) -> (i32, i32) {
    %c0_i32 = arith.constant 0 : i32
    %c0_i32_0 = arith.constant 0 : i32
    return %arg0, %c0_i32 : i32, i32
  }
  func.func @transform_2(%arg0: i32) -> (i32, i32, i32) {
    %c0_i32 = arith.constant 0 : i32
    %c0_i32_0 = arith.constant 0 : i32
    %c0_i32_1 = arith.constant 0 : i32
    return %arg0, %c0_i32, %c0_i32_0 : i32, i32, i32
  }
}

</mosaic_0001>

<llo_original>
// kernel: tpu_custom_call.1
$region0: #{tpu_custom_call.1}
  #allocation0 [shape = 'u32[]', space=smem, size = 0x4, offset = 0x4, fixed_abs, tag = 'smem constant byte address 0x4 - core index']
  #allocation1 [shape = 'u32[144,128]{1,0:T(1,128)}', space=vmem, size = 0x12000, scoped, tag = 'internal scratch']
  %s0 = inlined_call_operand.hbm [shape: f32[512,128], index: 0, kind: input, shape index: {}]
  %s1 = inlined_call_operand.hbm [shape: f32[4,512], index: 1, kind: input, shape index: {}]
  %s2 = inlined_call_operand.hbm [shape: f32[2,4,128], index: 2, kind: output, shape index: {}]
  %s3 = sld [smem:[#allocation0]]
  $region26: #{tpu_custom_call.1} parent=0
    _
  %s5 = ssub.s32 1, %s3
  %s6 = scalar_select 0, %s5, %s3
  $region1: #{tpu_custom_call.1} parent=0
    #allocation2 [shape = 'u8[262144]{0}', space=vmem, size = 0x40000, scoped, tag = 'input window, operand 0, single buffered']
    #allocation3 [shape = 's32[1]{0}', space=sflag, size = 0x4, scoped, tag = 'scoped memory for tpu_custom_call.1']
    #allocation4 [shape = 's32[1]{0}', space=sflag, size = 0x4, scoped, tag = 'scoped memory for tpu_custom_call.1']
    #allocation5 [shape = 'u8[8192]{0}', space=vmem, size = 0x2000, scoped, tag = 'input window, operand 1, single buffered']
    #allocation6 [shape = 's32[1]{0}', space=sflag, size = 0x4, scoped, tag = 'scoped memory for tpu_custom_call.1']
    #allocation7 [shape = 'u8[4096]{0}', space=vmem, size = 0x1000, scoped, tag = 'output window, operand 0, single buffered']
    %7 = vsyncpa [#allocation3], 0
    %8 = vsyncpa [#allocation6], 0
    %9 = vsyncpa [#allocation4], 0
    // Predicated region
    $region2: #{tpu_custom_call.1} parent=1 // pred_check
      _
    $region3: #{tpu_custom_call.1} parent=1 // pred_check_branch
      %11 = sbr.rel (0) target = $region5
    $region4: #{tpu_custom_call.1} parent=1 // pred_region
      %s13 = ssub.s32 8192, 8192
      %14 = vsyncadd [#allocation3], %s13
      %s15 = sshll.u32 [#allocation2], 4
      %s16 = int_to_ptr.vmem [resolvable:$true] %s15
      %21 = dma.hbm_to_vmem [thread:$0]  %s0, 8192, %s16, [#allocation3], 128, 128, 8
    $region5: #{tpu_custom_call.1} parent=1 // pred_fallthru
      _
    // Predicated region
    $region6: #{tpu_custom_call.1} parent=1 // pred_check
      _
    $region7: #{tpu_custom_call.1} parent=1 // pred_check_branch
      %23 = sbr.rel (0) target = $region9
    $region8: #{tpu_custom_call.1} parent=1 // pred_region
      %s25 = ssub.s32 256, 256
      %26 = vsyncadd [#allocation6], %s25
      %s28 = sshll.u32 [#allocation5], 4
      %s29 = int_to_ptr.vmem [resolvable:$true] %s28
      %31 = dma.hbm_to_vmem [thread:$0]  %s1, 256, %s29, [#allocation6]
    $region9: #{tpu_custom_call.1} parent=1 // pred_fallthru
      _
    // Predicated region
    $region10: #{tpu_custom_call.1} parent=1 // pred_check
      _
    $region11: #{tpu_custom_call.1} parent=1 // pred_check_branch
      %33 = sbr.rel (0) target = $region13
    $region12: #{tpu_custom_call.1} parent=1 // pred_region
      %34 = dma.done [#allocation3], 8192
    $region13: #{tpu_custom_call.1} parent=1 // pred_fallthru
      _
    // Predicated region
    $region14: #{tpu_custom_call.1} parent=1 // pred_check
      _
    $region15: #{tpu_custom_call.1} parent=1 // pred_check_branch
      %36 = sbr.rel (0) target = $region17
    $region16: #{tpu_custom_call.1} parent=1 // pred_region
      %37 = dma.done [#allocation6], 256
    $region17: #{tpu_custom_call.1} parent=1 // pred_fallthru
      _
    %v38 = vld [vmem:[#allocation5] sm:$0xff]
    %v39 = vld [vmem:[#allocation5 + $0x8] sm:$0xff]
    %v40 = vld [vmem:[#allocation2] sm:$0xff]
    %v41 = vld [vmem:[#allocation2 + $0x8] sm:$0xff]
    %v42 = vld [vmem:[#allocation2 + $0x10] sm:$0xff]
    %v43 = vld [vmem:[#allocation2 + $0x18] sm:$0xff]
    %v44 = vld [vmem:[#allocation2 + $0x20] sm:$0xff]
    %v45 = vld [vmem:[#allocation2 + $0x28] sm:$0xff]
    %v46 = vld [vmem:[#allocation2 + $0x30] sm:$0xff]
    %v47 = vld [vmem:[#allocation2 + $0x38] sm:$0xff]
    %v48 = vld [vmem:[#allocation2 + $0x40] sm:$0xff]
    %v49 = vld [vmem:[#allocation2 + $0x48] sm:$0xff]
    %v50 = vld [vmem:[#allocation2 + $0x50] sm:$0xff]
    %v51 = vld [vmem:[#allocation2 + $0x58] sm:$0xff]
    %v52 = vld [vmem:[#allocation2 + $0x60] sm:$0xff]
    %v53 = vld [vmem:[#allocation2 + $0x68] sm:$0xff]
    %v54 = vld [vmem:[#allocation2 + $0x70] sm:$0xff]
    %v55 = vld [vmem:[#allocation2 + $0x78] sm:$0xff]
    %v56 = vld [vmem:[#allocation2 + $0x80] sm:$0xff]
    %v57 = vld [vmem:[#allocation2 + $0x88] sm:$0xff]
    %v58 = vld [vmem:[#allocation2 + $0x90] sm:$0xff]
    %v59 = vld [vmem:[#allocation2 + $0x98] sm:$0xff]
    %v60 = vld [vmem:[#allocation2 + $0xa0] sm:$0xff]
    %v61 = vld [vmem:[#allocation2 + $0xa8] sm:$0xff]
    %v62 = vld [vmem:[#allocation2 + $0xb0] sm:$0xff]
    %v63 = vld [vmem:[#allocation2 + $0xb8] sm:$0xff]
    %v64 = vld [vmem:[#allocation2 + $0xc0] sm:$0xff]
    %v65 = vld [vmem:[#allocation2 + $0xc8] sm:$0xff]
    %v66 = vld [vmem:[#allocation2 + $0xd0] sm:$0xff]
    %v67 = vld [vmem:[#allocation2 + $0xd8] sm:$0xff]
    %v68 = vld [vmem:[#allocation2 + $0xe0] sm:$0xff]
    %v69 = vld [vmem:[#allocation2 + $0xe8] sm:$0xff]
    %v70 = vld [vmem:[#allocation2 + $0xf0] sm:$0xff]
    %v71 = vld [vmem:[#allocation2 + $0xf8] sm:$0xff]
    %v72 = vld [vmem:[#allocation2 + $0x100] sm:$0xff]
    %v73 = vld [vmem:[#allocation2 + $0x108] sm:$0xff]
    %v74 = vld [vmem:[#allocation2 + $0x110] sm:$0xff]
    %v75 = vld [vmem:[#allocation2 + $0x118] sm:$0xff]
    %v76 = vld [vmem:[#allocation2 + $0x120] sm:$0xff]
    %v77 = vld [vmem:[#allocation2 + $0x128] sm:$0xff]
    %v78 = vld [vmem:[#allocation2 + $0x130] sm:$0xff]
    %v79 = vld [vmem:[#allocation2 + $0x138] sm:$0xff]
    %v80 = vld [vmem:[#allocation2 + $0x140] sm:$0xff]
    %v81 = vld [vmem:[#allocation2 + $0x148] sm:$0xff]
    %v82 = vld [vmem:[#allocation2 + $0x150] sm:$0xff]
    %v83 = vld [vmem:[#allocation2 + $0x158] sm:$0xff]
    %v84 = vld [vmem:[#allocation2 + $0x160] sm:$0xff]
    %v85 = vld [vmem:[#allocation2 + $0x168] sm:$0xff]
    %v86 = vld [vmem:[#allocation2 + $0x170] sm:$0xff]
    %v87 = vld [vmem:[#allocation2 + $0x178] sm:$0xff]
    %v88 = vld [vmem:[#allocation2 + $0x180] sm:$0xff]
    %v89 = vld [vmem:[#allocation2 + $0x188] sm:$0xff]
    %v90 = vld [vmem:[#allocation2 + $0x190] sm:$0xff]
    %v91 = vld [vmem:[#allocation2 + $0x198] sm:$0xff]
    %v92 = vld [vmem:[#allocation2 + $0x1a0] sm:$0xff]
    %v93 = vld [vmem:[#allocation2 + $0x1a8] sm:$0xff]
    %v94 = vld [vmem:[#allocation2 + $0x1b0] sm:$0xff]
    %v95 = vld [vmem:[#allocation2 + $0x1b8] sm:$0xff]
    %v96 = vld [vmem:[#allocation2 + $0x1c0] sm:$0xff]
    %v97 = vld [vmem:[#allocation2 + $0x1c8] sm:$0xff]
    %v98 = vld [vmem:[#allocation2 + $0x1d0] sm:$0xff]
    %v99 = vld [vmem:[#allocation2 + $0x1d8] sm:$0xff]
    %v100 = vld [vmem:[#allocation2 + $0x1e0] sm:$0xff]
    %v101 = vld [vmem:[#allocation2 + $0x1e8] sm:$0xff]
    %v102 = vld [vmem:[#allocation2 + $0x1f0] sm:$0xff]
    %v103 = vld [vmem:[#allocation2 + $0x1f8] sm:$0xff]
    %v106 = vcombine.high %v38, %v38
    %v107 = vcombine.high %v39, %v39
    %110 = vmatprep.subr.mxu0 0.0
    %111 = vmatpush1.msra.mxu0 %v40
    %112 = vmatprep.subr.mxu0 0.0
    %113 = vmatpush1.msra.mxu0 %v41
    %114 = vmatprep.subr.mxu0 0.0
    %115 = vmatpush1.msra.mxu0 %v42
    %116 = vmatprep.subr.mxu0 0.0
    %117 = vmatpush1.msra.mxu0 %v43
    %118 = vmatprep.subr.mxu0 0.0
    %119 = vmatpush1.msra.mxu0 %v44
    %120 = vmatprep.subr.mxu0 0.0
    %121 = vmatpush1.msra.mxu0 %v45
    %122 = vmatprep.subr.mxu0 0.0
    %123 = vmatpush1.msra.mxu0 %v46
    %124 = vmatprep.subr.mxu0 0.0
    %125 = vmatpush1.msra.mxu0 %v47
    %126 = vmatprep.subr.mxu0 0.0
    %127 = vmatpush1.msra.mxu0 %v48
    %128 = vmatprep.subr.mxu0 0.0
    %129 = vmatpush1.msra.mxu0 %v49
    %130 = vmatprep.subr.mxu0 0.0
    %131 = vmatpush1.msra.mxu0 %v50
    %132 = vmatprep.subr.mxu0 0.0
    %133 = vmatpush1.msra.mxu0 %v51
    %134 = vmatprep.subr.mxu0 0.0
    %135 = vmatpush1.msra.mxu0 %v52
    %136 = vmatprep.subr.mxu0 0.0
    %137 = vmatpush1.msra.mxu0 %v53
    %138 = vmatprep.subr.mxu0 0.0
    %139 = vmatpush1.msra.mxu0 %v54
    %140 = vmatprep.subr.mxu0 0.0
    %141 = vmatpush1.msra.mxu0 %v55
    %142 = vmatprep.subr.mxu0 0.0
    %143 = vmatpush1.msra.mxu0 %v56
    %144 = vmatprep.subr.mxu0 0.0
    %145 = vmatpush1.msra.mxu0 %v57
    %146 = vmatprep.subr.mxu0 0.0
    %147 = vmatpush1.msra.mxu0 %v58
    %148 = vmatprep.subr.mxu0 0.0
    %149 = vmatpush1.msra.mxu0 %v59
    %150 = vmatprep.subr.mxu0 0.0
    %151 = vmatpush1.msra.mxu0 %v60
    %152 = vmatprep.subr.mxu0 0.0
    %153 = vmatpush1.msra.mxu0 %v61
    %154 = vmatprep.subr.mxu0 0.0
    %155 = vmatpush1.msra.mxu0 %v62
    %156 = vmatprep.subr.mxu0 0.0
    %157 = vmatpush1.msra.mxu0 %v63
    %158 = vmatprep.subr.mxu0 0.0
    %159 = vmatpush1.msra.mxu0 %v64
    %160 = vmatprep.subr.mxu0 0.0
    %161 = vmatpush1.msra.mxu0 %v65
    %162 = vmatprep.subr.mxu0 0.0
    %163 = vmatpush1.msra.mxu0 %v66
    %164 = vmatprep.subr.mxu0 0.0
    %165 = vmatpush1.msra.mxu0 %v67
    %166 = vmatprep.subr.mxu0 0.0
    %167 = vmatpush1.msra.mxu0 %v68
    %168 = vmatprep.subr.mxu0 0.0
    %169 = vmatpush1.msra.mxu0 %v69
    %170 = vmatprep.subr.mxu0 0.0
    %171 = vmatpush1.msra.mxu0 %v70
    %172 = vmatprep.subr.mxu0 0.0
    %173 = vmatpush1.msra.mxu0 %v71
    %174 = vmatprep.mubr.f32.mxu0 %v106
    %175 = vmatmul.mubr.f32.gmra.mrb[0].mxu0 %v38
    %v176 = vpop.f32.mrb[0].mxu0
    %v177 = vadd.f32 0.0, %v176
    %v178 = vpop.f32.mrb[0].mxu0
    %179 = vdwg.mxu0
    %180 = vmatprep.subr.mxu0 0.0
    %181 = vmatpush1.msra.mxu0 %v72
    %182 = vmatprep.subr.mxu0 0.0
    %183 = vmatpush1.msra.mxu0 %v73
    %184 = vmatprep.subr.mxu0 0.0
    %185 = vmatpush1.msra.mxu0 %v74
    %186 = vmatprep.subr.mxu0 0.0
    %187 = vmatpush1.msra.mxu0 %v75
    %188 = vmatprep.subr.mxu0 0.0
    %189 = vmatpush1.msra.mxu0 %v76
    %190 = vmatprep.subr.mxu0 0.0
    %191 = vmatpush1.msra.mxu0 %v77
    %192 = vmatprep.subr.mxu0 0.0
    %193 = vmatpush1.msra.mxu0 %v78
    %194 = vmatprep.subr.mxu0 0.0
    %195 = vmatpush1.msra.mxu0 %v79
    %196 = vmatprep.subr.mxu0 0.0
    %197 = vmatpush1.msra.mxu0 %v80
    %198 = vmatprep.subr.mxu0 0.0
    %199 = vmatpush1.msra.mxu0 %v81
    %200 = vmatprep.subr.mxu0 0.0
    %201 = vmatpush1.msra.mxu0 %v82
    %202 = vmatprep.subr.mxu0 0.0
    %203 = vmatpush1.msra.mxu0 %v83
    %204 = vmatprep.subr.mxu0 0.0
    %205 = vmatpush1.msra.mxu0 %v84
    %206 = vmatprep.subr.mxu0 0.0
    %207 = vmatpush1.msra.mxu0 %v85
    %208 = vmatprep.subr.mxu0 0.0
    %209 = vmatpush1.msra.mxu0 %v86
    %210 = vmatprep.subr.mxu0 0.0
    %211 = vmatpush1.msra.mxu0 %v87
    %212 = vmatprep.subr.mxu0 0.0
    %213 = vmatpush1.msra.mxu0 %v88
    %214 = vmatprep.subr.mxu0 0.0
    %215 = vmatpush1.msra.mxu0 %v89
    %216 = vmatprep.subr.mxu0 0.0
    %217 = vmatpush1.msra.mxu0 %v90
    %218 = vmatprep.subr.mxu0 0.0
    %219 = vmatpush1.msra.mxu0 %v91
    %220 = vmatprep.subr.mxu0 0.0
    %221 = vmatpush1.msra.mxu0 %v92
    %222 = vmatprep.subr.mxu0 0.0
    %223 = vmatpush1.msra.mxu0 %v93
    %224 = vmatprep.subr.mxu0 0.0
    %225 = vmatpush1.msra.mxu0 %v94
    %226 = vmatprep.subr.mxu0 0.0
    %227 = vmatpush1.msra.mxu0 %v95
    %228 = vmatprep.subr.mxu0 0.0
    %229 = vmatpush1.msra.mxu0 %v96
    %230 = vmatprep.subr.mxu0 0.0
    %231 = vmatpush1.msra.mxu0 %v97
    %232 = vmatprep.subr.mxu0 0.0
    %233 = vmatpush1.msra.mxu0 %v98
    %234 = vmatprep.subr.mxu0 0.0
    %235 = vmatpush1.msra.mxu0 %v99
    %236 = vmatprep.subr.mxu0 0.0
    %237 = vmatpush1.msra.mxu0 %v100
    %238 = vmatprep.subr.mxu0 0.0
    %239 = vmatpush1.msra.mxu0 %v101
    %240 = vmatprep.subr.mxu0 0.0
    %241 = vmatpush1.msra.mxu0 %v102
    %242 = vmatprep.subr.mxu0 0.0
    %243 = vmatpush1.msra.mxu0 %v103
    %244 = vmatprep.mubr.f32.mxu0 %v107
    %245 = vmatmul.mubr.f32.gmra.mrb[0].mxu0 %v39
    %v246 = vpop.f32.mrb[0].mxu0
    %v247 = vadd.f32 %v177, %v246
    %v248 = vpop.f32.mrb[0].mxu0
    %249 = vdwg.mxu0
    %v252 = vunpack.c.l.s4 1983009808
    %v253 = vunpack.c.0.s8 %v252
    %v254 = vlaneseq
    %v255 = vshrl.u32 %v254, 7
    %v256 = vsub.s32 %v253, %v255
    %v257 = vrot.slane %v247, %v256
    %v258 = vcombine.high %v257, %v257
    %261 = vst [vmem:[#allocation7] sm:$0x1] 0.0
    %262 = vst [vmem:[#allocation7 + $0x4] sm:$0x1] 0.0
    %263 = vst [vmem:[#allocation7 + $0x3] sm:$0x1] 0.0
    %264 = vst [vmem:[#allocation7 + $0x7] sm:$0x1] 0.0
    %265 = vst [vmem:[#allocation7 + $0x1] sm:$0x3] %v257
    %266 = vst [vmem:[#allocation7 + $0x5] sm:$0x3] %v258
    // Predicated region
    $region18: #{tpu_custom_call.1} parent=1 // pred_check
      _
    $region19: #{tpu_custom_call.1} parent=1 // pred_check_branch
      %268 = sbr.rel (0) target = $region21
    $region20: #{tpu_custom_call.1} parent=1 // pred_region
      %s270 = ssub.s32 128, 128
      %271 = vsyncadd [#allocation4], %s270
      %s272 = sshll.u32 [#allocation7], 4
      %s273 = int_to_ptr.vmem [resolvable:$true] %s272
      %278 = dma.vmem_to_hbm [thread:$0]  %s273, 128, %s2, [#allocation4], 64, 64, 4
    $region21: #{tpu_custom_call.1} parent=1 // pred_fallthru
      _
    // Predicated region
    $region22: #{tpu_custom_call.1} parent=1 // pred_check
      _
    $region23: #{tpu_custom_call.1} parent=1 // pred_check_branch
      %280 = sbr.rel (0) target = $region25
    $region24: #{tpu_custom_call.1} parent=1 // pred_region
      %281 = dma.done [#allocation4], 128
    $region25: #{tpu_custom_call.1} parent=1 // pred_fallthru
      _
    %282 = vsyncpa [#allocation3], 1
    %283 = vsyncpa [#allocation6], 1
    %284 = vsyncpa [#allocation4], 1

</llo_original>
